<compile_context>
chip_gen: v7x
topology: tpu7x:2x2x1
jax: 0.10.0
libtpu: 0.0.40
codegen_flags: <defaults>
</compile_context>

<pallas_src>
import functools

import jax
import jax.numpy as jnp
from jax.experimental import pallas as pl
from jax.experimental.pallas import tpu as pltpu

INPUT_SIZE = 10
HIDDEN_SIZE = 20
OUTPUT_SIZE = 1

LANE = 128     # vreg lane width
SUBLANE = 8    # vreg sublane count (f32)


def _round_up(n, m):
    return (n + m - 1) // m * m


def _make_rnn_kernel(T, Bp):
    def rnn_kernel(x_ref, wih_ref, whh_ref, b_ref, wfc_ref, bfc_ref, out_ref):
        # x_ref:   (T*Bp, I)  VMEM  time-major, batch-padded, pre-flattened input
        # wih_ref: (I,  Hp)   VMEM  W_ih^T, zero-padded to lane-dense Hp
        # whh_ref: (Hp, Hp)   VMEM  W_hh^T, zero-padded
        # b_ref:   (1,  Hp)   VMEM  b_ih + b_hh, zero-padded
        # wfc_ref: (Hp, Op)   VMEM  W_fc^T, zero-padded
        # bfc_ref: (1,  Op)   VMEM  b_fc, zero-padded
        # out_ref: (Bp, Op)   VMEM  lane-dense padded output
        Hp = whh_ref.shape[0]

        # ---- hoisted input projection: one MXU matmul for all timesteps.
        # u rows are time-major: rows [t*Bp, (t+1)*Bp) are timestep t.
        u = jnp.dot(x_ref[...], wih_ref[...],
                    preferred_element_type=jnp.float32) + b_ref[...]

        whh = whh_ref[...]

        # ---- recurrence: fully unrolled; each step reads one vreg-aligned
        # (Bp, Hp) slab of u (Bp == 8 sublanes, Hp multiple of 128 lanes).
        h = jnp.zeros((Bp, Hp), jnp.float32)
        for t in range(T):                       # T static -> unrolled
            u_t = u[t * Bp:(t + 1) * Bp, :]      # static, tile-aligned slice
            h = jnp.tanh(u_t + jnp.dot(h, whh,
                                       preferred_element_type=jnp.float32))

        # ---- final FC on the last hidden state, lane-dense padded store.
        out_ref[...] = (
            jnp.dot(h, wfc_ref[...], preferred_element_type=jnp.float32)
            + bfc_ref[...]
        )

    return rnn_kernel


def prepare_params(w_ih, w_hh, b_ih, b_hh, w_fc, b_fc):
    """One-time preprocessing: transpose + zero-pad parameters to lane-dense
    layouts. Call once at init; the per-call forward only touches x."""
    H, _I = w_ih.shape
    O = w_fc.shape[0]
    Hp = _round_up(H, LANE)
    Op = _round_up(O, LANE)
    f32 = jnp.float32
    wih_p = jnp.zeros((_I, Hp), f32).at[:, :H].set(jnp.transpose(w_ih).astype(f32))
    whh_p = jnp.zeros((Hp, Hp), f32).at[:H, :H].set(jnp.transpose(w_hh).astype(f32))
    b_p = jnp.zeros((1, Hp), f32).at[0, :H].set((b_ih + b_hh).astype(f32))
    wfc_p = jnp.zeros((Hp, Op), f32).at[:H, :O].set(jnp.transpose(w_fc).astype(f32))
    bfc_p = jnp.zeros((1, Op), f32).at[0, :O].set(b_fc.astype(f32))
    return (wih_p, whh_p, b_p, wfc_p, bfc_p)


@functools.partial(jax.jit, static_argnames=("hidden_size", "output_size"))
def simple_rnn_forward(x, params, *, hidden_size=HIDDEN_SIZE,
                       output_size=OUTPUT_SIZE):
    """x: (B, T, I) float32 (batch_first). params: prepare_params(...) output.
    Returns (B, output_size)."""
    wih_p, whh_p, b_p, wfc_p, bfc_p = params
    B, T, I = x.shape
    H, O = hidden_size, output_size
    Hp = whh_p.shape[0]
    Op = wfc_p.shape[1]
    Bp = _round_up(max(B, SUBLANE), SUBLANE)   # sublane-dense batch

    # Per-call x handling only: (B,T,I) -> time-major (T,Bp,I) -> (T*Bp, I).
    # ~2.5 KiB of data; negligible next to the pallas_call.
    x_tm = jnp.transpose(x.astype(jnp.float32), (1, 0, 2))        # (T, B, I)
    x_tm = jnp.pad(x_tm, ((0, 0), (0, Bp - B), (0, 0)))           # (T, Bp, I)
    x2 = x_tm.reshape(T * Bp, I)                                  # (T*Bp, I)

    # Cost estimate from the TRUE (unpadded) dimensions.
    flops = (2 * B * T * I * H          # hoisted input projection
             + 2 * T * B * H * H        # recurrence
             + 2 * B * H * O)           # final FC
    bytes_accessed = 4 * (B * T * I + I * H + H * H + H + H * O + O + B * O)

    vmem = pl.BlockSpec(memory_space=pltpu.MemorySpace.VMEM)
    out_p = pl.pallas_call(
        _make_rnn_kernel(T, Bp),
        out_shape=jax.ShapeDtypeStruct((Bp, Op), jnp.float32),
        in_specs=[vmem] * 6,
        out_specs=vmem,
        compiler_params=pltpu.CompilerParams(
            vmem_limit_bytes=2 * 1024 * 1024),
        cost_estimate=pl.CostEstimate(
            flops=flops,
            transcendentals=T * B * H,
            bytes_accessed=bytes_accessed),
    )(x2, wih_p, whh_p, b_p, wfc_p, bfc_p)

    return out_p[:B, :O]


def reference_forward(x, w_ih, w_hh, b_ih, b_hh, w_fc, b_fc):
    B, T, I = x.shape
    H = w_hh.shape[0]
    h = jnp.zeros((B, H), jnp.float32)
    for t in range(T):
        h = jnp.tanh(x[:, t, :] @ w_ih.T + b_ih + h @ w_hh.T + b_hh)
    return h @ w_fc.T + b_fc


if __name__ == "__main__":
    key = jax.random.PRNGKey(0)
    kx, k1, k2, k3, k4, k5, k6 = jax.random.split(key, 7)

    B, T = 2, 8
    I, H, O = INPUT_SIZE, HIDDEN_SIZE, OUTPUT_SIZE

    # deterministic PyTorch-style uniform(-1/sqrt(H), 1/sqrt(H)) init
    s = 1.0 / jnp.sqrt(jnp.float32(H))
    w_ih = jax.random.uniform(k1, (H, I), jnp.float32, -s, s)
    w_hh = jax.random.uniform(k2, (H, H), jnp.float32, -s, s)
    b_ih = jax.random.uniform(k3, (H,), jnp.float32, -s, s)
    b_hh = jax.random.uniform(k4, (H,), jnp.float32, -s, s)
    w_fc = jax.random.uniform(k5, (O, H), jnp.float32, -s, s)
    b_fc = jax.random.uniform(k6, (O,), jnp.float32, -s, s)

    x = jax.random.normal(kx, (B, T, I), jnp.float32)

    # One-time parameter preprocessing (not on the per-call path).
    params = jax.block_until_ready(
        prepare_params(w_ih, w_hh, b_ih, b_hh, w_fc, b_fc))

    out = simple_rnn_forward(x, params)
    out = jax.block_until_ready(out)

    ref = reference_forward(x, w_ih, w_hh, b_ih, b_hh, w_fc, b_fc)
    assert out.shape == (B, O)
    assert jnp.allclose(out, ref, atol=1e-5, rtol=1e-5)

    print("KERNEL_OK")
</pallas_src>

<mosaic_0001>
module attributes {stable_mosaic.version = 11 : i64} {
  func.func @rnn_kernel(%arg0: memref<64x10xf32, #tpu.memory_space<vmem>>, %arg1: memref<10x128xf32, #tpu.memory_space<vmem>>, %arg2: memref<128x128xf32, #tpu.memory_space<vmem>>, %arg3: memref<1x128xf32, #tpu.memory_space<vmem>>, %arg4: memref<128x128xf32, #tpu.memory_space<vmem>>, %arg5: memref<1x128xf32, #tpu.memory_space<vmem>>, %arg6: memref<8x128xf32, #tpu.memory_space<vmem>>) attributes {dimension_semantics = [], scalar_prefetch = 0 : i64, scratch_operands = 0 : i64, tpu.core_type = #tpu.core_type<tc>} {
    %c0 = arith.constant 0 : index
    %c0_0 = arith.constant 0 : index
    %0 = vector.load %arg0[%c0, %c0_0] : memref<64x10xf32, #tpu.memory_space<vmem>>, vector<64x10xf32>
    %c0_1 = arith.constant 0 : index
    %c0_2 = arith.constant 0 : index
    %1 = vector.load %arg1[%c0_1, %c0_2] : memref<10x128xf32, #tpu.memory_space<vmem>>, vector<10x128xf32>
    %cst = arith.constant dense<0.000000e+00> : vector<64x128xf32>
    %2 = tpu.matmul %0, %1, %cst {dimension_numbers = #tpu.dot_dimension_numbers<[1], [0], [0], [1], [0, 0, 1, 1], [], []>} : vector<64x10xf32>, vector<10x128xf32>, vector<64x128xf32> -> vector<64x128xf32>
    %c0_3 = arith.constant 0 : index
    %c0_4 = arith.constant 0 : index
    %3 = vector.load %arg3[%c0_3, %c0_4] : memref<1x128xf32, #tpu.memory_space<vmem>>, vector<1x128xf32>
    %4 = vector.broadcast %3 : vector<1x128xf32> to vector<64x128xf32>
    %5 = arith.addf %2, %4 : vector<64x128xf32>
    %c0_5 = arith.constant 0 : index
    %c0_6 = arith.constant 0 : index
    %6 = vector.load %arg2[%c0_5, %c0_6] : memref<128x128xf32, #tpu.memory_space<vmem>>, vector<128x128xf32>
    %cst_7 = arith.constant 0.000000e+00 : f32
    %7 = vector.broadcast %cst_7 : f32 to vector<8x128xf32>
    %8 = vector.extract_strided_slice %5 {offsets = [0, 0], sizes = [8, 128], strides = [1, 1]} : vector<64x128xf32> to vector<8x128xf32>
    %cst_8 = arith.constant dense<0.000000e+00> : vector<8x128xf32>
    %9 = tpu.matmul %7, %6, %cst_8 {dimension_numbers = #tpu.dot_dimension_numbers<[1], [0], [0], [1], [0, 0, 1, 1], [], []>} : vector<8x128xf32>, vector<128x128xf32>, vector<8x128xf32> -> vector<8x128xf32>
    %10 = arith.addf %8, %9 : vector<8x128xf32>
    %11 = math.tanh %10 : vector<8x128xf32>
    %12 = vector.extract_strided_slice %5 {offsets = [8, 0], sizes = [8, 128], strides = [1, 1]} : vector<64x128xf32> to vector<8x128xf32>
    %cst_9 = arith.constant dense<0.000000e+00> : vector<8x128xf32>
    %13 = tpu.matmul %11, %6, %cst_9 {dimension_numbers = #tpu.dot_dimension_numbers<[1], [0], [0], [1], [0, 0, 1, 1], [], []>} : vector<8x128xf32>, vector<128x128xf32>, vector<8x128xf32> -> vector<8x128xf32>
    %14 = arith.addf %12, %13 : vector<8x128xf32>
    %15 = math.tanh %14 : vector<8x128xf32>
    %16 = vector.extract_strided_slice %5 {offsets = [16, 0], sizes = [8, 128], strides = [1, 1]} : vector<64x128xf32> to vector<8x128xf32>
    %cst_10 = arith.constant dense<0.000000e+00> : vector<8x128xf32>
    %17 = tpu.matmul %15, %6, %cst_10 {dimension_numbers = #tpu.dot_dimension_numbers<[1], [0], [0], [1], [0, 0, 1, 1], [], []>} : vector<8x128xf32>, vector<128x128xf32>, vector<8x128xf32> -> vector<8x128xf32>
    %18 = arith.addf %16, %17 : vector<8x128xf32>
    %19 = math.tanh %18 : vector<8x128xf32>
    %20 = vector.extract_strided_slice %5 {offsets = [24, 0], sizes = [8, 128], strides = [1, 1]} : vector<64x128xf32> to vector<8x128xf32>
    %cst_11 = arith.constant dense<0.000000e+00> : vector<8x128xf32>
    %21 = tpu.matmul %19, %6, %cst_11 {dimension_numbers = #tpu.dot_dimension_numbers<[1], [0], [0], [1], [0, 0, 1, 1], [], []>} : vector<8x128xf32>, vector<128x128xf32>, vector<8x128xf32> -> vector<8x128xf32>
    %22 = arith.addf %20, %21 : vector<8x128xf32>
    %23 = math.tanh %22 : vector<8x128xf32>
    %24 = vector.extract_strided_slice %5 {offsets = [32, 0], sizes = [8, 128], strides = [1, 1]} : vector<64x128xf32> to vector<8x128xf32>
    %cst_12 = arith.constant dense<0.000000e+00> : vector<8x128xf32>
    %25 = tpu.matmul %23, %6, %cst_12 {dimension_numbers = #tpu.dot_dimension_numbers<[1], [0], [0], [1], [0, 0, 1, 1], [], []>} : vector<8x128xf32>, vector<128x128xf32>, vector<8x128xf32> -> vector<8x128xf32>
    %26 = arith.addf %24, %25 : vector<8x128xf32>
    %27 = math.tanh %26 : vector<8x128xf32>
    %28 = vector.extract_strided_slice %5 {offsets = [40, 0], sizes = [8, 128], strides = [1, 1]} : vector<64x128xf32> to vector<8x128xf32>
    %cst_13 = arith.constant dense<0.000000e+00> : vector<8x128xf32>
    %29 = tpu.matmul %27, %6, %cst_13 {dimension_numbers = #tpu.dot_dimension_numbers<[1], [0], [0], [1], [0, 0, 1, 1], [], []>} : vector<8x128xf32>, vector<128x128xf32>, vector<8x128xf32> -> vector<8x128xf32>
    %30 = arith.addf %28, %29 : vector<8x128xf32>
    %31 = math.tanh %30 : vector<8x128xf32>
    %32 = vector.extract_strided_slice %5 {offsets = [48, 0], sizes = [8, 128], strides = [1, 1]} : vector<64x128xf32> to vector<8x128xf32>
    %cst_14 = arith.constant dense<0.000000e+00> : vector<8x128xf32>
    %33 = tpu.matmul %31, %6, %cst_14 {dimension_numbers = #tpu.dot_dimension_numbers<[1], [0], [0], [1], [0, 0, 1, 1], [], []>} : vector<8x128xf32>, vector<128x128xf32>, vector<8x128xf32> -> vector<8x128xf32>
    %34 = arith.addf %32, %33 : vector<8x128xf32>
    %35 = math.tanh %34 : vector<8x128xf32>
    %36 = vector.extract_strided_slice %5 {offsets = [56, 0], sizes = [8, 128], strides = [1, 1]} : vector<64x128xf32> to vector<8x128xf32>
    %cst_15 = arith.constant dense<0.000000e+00> : vector<8x128xf32>
    %37 = tpu.matmul %35, %6, %cst_15 {dimension_numbers = #tpu.dot_dimension_numbers<[1], [0], [0], [1], [0, 0, 1, 1], [], []>} : vector<8x128xf32>, vector<128x128xf32>, vector<8x128xf32> -> vector<8x128xf32>
    %38 = arith.addf %36, %37 : vector<8x128xf32>
    %39 = math.tanh %38 : vector<8x128xf32>
    %c0_16 = arith.constant 0 : index
    %c0_17 = arith.constant 0 : index
    %40 = vector.load %arg4[%c0_16, %c0_17] : memref<128x128xf32, #tpu.memory_space<vmem>>, vector<128x128xf32>
    %cst_18 = arith.constant dense<0.000000e+00> : vector<8x128xf32>
    %41 = tpu.matmul %39, %40, %cst_18 {dimension_numbers = #tpu.dot_dimension_numbers<[1], [0], [0], [1], [0, 0, 1, 1], [], []>} : vector<8x128xf32>, vector<128x128xf32>, vector<8x128xf32> -> vector<8x128xf32>
    %c0_19 = arith.constant 0 : index
    %c0_20 = arith.constant 0 : index
    %42 = vector.load %arg5[%c0_19, %c0_20] : memref<1x128xf32, #tpu.memory_space<vmem>>, vector<1x128xf32>
    %43 = vector.broadcast %42 : vector<1x128xf32> to vector<8x128xf32>
    %44 = arith.addf %41, %43 : vector<8x128xf32>
    %c0_21 = arith.constant 0 : index
    %c0_22 = arith.constant 0 : index
    %45 = vector.load %arg6[%c0_21, %c0_22] : memref<8x128xf32, #tpu.memory_space<vmem>>, vector<8x128xf32>
    tpu.vector_store %arg6[%c0_21, %c0_22], %44 {strides = array<i32>} : memref<8x128xf32, #tpu.memory_space<vmem>>, vector<8x128xf32>,
    return
  }
}

</mosaic_0001>

<llo_original>
// kernel: simple_rnn_forward.1
$region0: #{simple_rnn_forward.1}
  #allocation0 [shape = 'u32[]', space=smem, size = 0x4, offset = 0x4, fixed_abs, tag = 'smem constant byte address 0x4 - core index']
  #allocation1 [shape = 'u32[144,128]{1,0:T(1,128)}', space=vmem, size = 0x12000, scoped, tag = 'internal scratch']
  %s0 = inlined_call_operand.vmem [shape: f32[64,10], index: 0, kind: input, shape index: {}]
  %s1 = inlined_call_operand.hbm [shape: f32[10,128], index: 1, kind: input, shape index: {}]
  %s2 = inlined_call_operand.hbm [shape: f32[128,128], index: 2, kind: input, shape index: {}]
  %s3 = inlined_call_operand.vmem [shape: f32[1,128], index: 3, kind: input, shape index: {}]
  %s4 = inlined_call_operand.vmem [shape: f32[128,128], index: 4, kind: input, shape index: {}]
  %s5 = inlined_call_operand.vmem [shape: f32[1,128], index: 5, kind: input, shape index: {}]
  %s6 = inlined_call_operand.vmem [shape: f32[8,128], index: 6, kind: output, shape index: {}]
  %s7 = sld [smem:[#allocation0]]
  $region42: #{simple_rnn_forward.1} parent=0
    _
  %s9 = ssub.s32 1, %s7
  %s10 = scalar_select 0, %s9, %s7
  $region1: #{simple_rnn_forward.1} parent=0
    #allocation2 [shape = 'u8[8192]{0}', space=vmem, size = 0x2000, scoped, tag = 'input window, operand 1, single buffered']
    #allocation3 [shape = 's32[1]{0}', space=sflag, size = 0x4, scoped, tag = 'scoped memory for simple_rnn_forward.1']
    #allocation4 [shape = 'u8[65536]{0}', space=vmem, size = 0x10000, scoped, tag = 'input window, operand 2, single buffered']
    #allocation5 [shape = 's32[1]{0}', space=sflag, size = 0x4, scoped, tag = 'scoped memory for simple_rnn_forward.1']
    %11 = vsyncpa [#allocation3], 0
    %12 = vsyncpa [#allocation5], 0
    // Predicated region
    $region2: #{simple_rnn_forward.1} parent=1 // pred_check
      _
    $region3: #{simple_rnn_forward.1} parent=1 // pred_check_branch
      %14 = sbr.rel (0) target = $region5
    $region4: #{simple_rnn_forward.1} parent=1 // pred_region
      _
    $region5: #{simple_rnn_forward.1} parent=1 // pred_fallthru
      _
    // Predicated region
    $region6: #{simple_rnn_forward.1} parent=1 // pred_check
      _
    $region7: #{simple_rnn_forward.1} parent=1 // pred_check_branch
      %16 = sbr.rel (0) target = $region9
    $region8: #{simple_rnn_forward.1} parent=1 // pred_region
      %s18 = ssub.s32 256, 256
      %19 = vsyncadd [#allocation3], %s18
      %s20 = sshll.u32 [#allocation2], 4
      %s21 = int_to_ptr.vmem [resolvable:$true] %s20
      %26 = dma.hbm_to_vmem [thread:$0]  %s1, 256, %s21, [#allocation3], 128, 128, 8
    $region9: #{simple_rnn_forward.1} parent=1 // pred_fallthru
      _
    // Predicated region
    $region10: #{simple_rnn_forward.1} parent=1 // pred_check
      _
    $region11: #{simple_rnn_forward.1} parent=1 // pred_check_branch
      %28 = sbr.rel (0) target = $region13
    $region12: #{simple_rnn_forward.1} parent=1 // pred_region
      %s30 = ssub.s32 2048, 2048
      %31 = vsyncadd [#allocation5], %s30
      %s32 = sshll.u32 [#allocation4], 4
      %s33 = int_to_ptr.vmem [resolvable:$true] %s32
      %38 = dma.hbm_to_vmem [thread:$0]  %s2, 2048, %s33, [#allocation5], 128, 128, 8
    $region13: #{simple_rnn_forward.1} parent=1 // pred_fallthru
      _
    // Predicated region
    $region14: #{simple_rnn_forward.1} parent=1 // pred_check
      _
    $region15: #{simple_rnn_forward.1} parent=1 // pred_check_branch
      %40 = sbr.rel (0) target = $region17
    $region16: #{simple_rnn_forward.1} parent=1 // pred_region
      _
    $region17: #{simple_rnn_forward.1} parent=1 // pred_fallthru
      _
    // Predicated region
    $region18: #{simple_rnn_forward.1} parent=1 // pred_check
      _
    $region19: #{simple_rnn_forward.1} parent=1 // pred_check_branch
      %42 = sbr.rel (0) target = $region21
    $region20: #{simple_rnn_forward.1} parent=1 // pred_region
      _
    $region21: #{simple_rnn_forward.1} parent=1 // pred_fallthru
      _
    // Predicated region
    $region22: #{simple_rnn_forward.1} parent=1 // pred_check
      _
    $region23: #{simple_rnn_forward.1} parent=1 // pred_check_branch
      %44 = sbr.rel (0) target = $region25
    $region24: #{simple_rnn_forward.1} parent=1 // pred_region
      _
    $region25: #{simple_rnn_forward.1} parent=1 // pred_fallthru
      _
    // Predicated region
    $region26: #{simple_rnn_forward.1} parent=1 // pred_check
      _
    $region27: #{simple_rnn_forward.1} parent=1 // pred_check_branch
      %46 = sbr.rel (0) target = $region29
    $region28: #{simple_rnn_forward.1} parent=1 // pred_region
      %47 = dma.done [#allocation3], 256
    $region29: #{simple_rnn_forward.1} parent=1 // pred_fallthru
      _
    // Predicated region
    $region30: #{simple_rnn_forward.1} parent=1 // pred_check
      _
    $region31: #{simple_rnn_forward.1} parent=1 // pred_check_branch
      %49 = sbr.rel (0) target = $region33
    $region32: #{simple_rnn_forward.1} parent=1 // pred_region
      %50 = dma.done [#allocation5], 2048
    $region33: #{simple_rnn_forward.1} parent=1 // pred_fallthru
      _
    %v51 = vld [vmem:[%s0] sm:$0xff]
    %v52 = vld [vmem:[%s0 + $0x8] sm:$0xff]
    %v53 = vld [vmem:[%s0 + $0x10] sm:$0xff]
    %v54 = vld [vmem:[%s0 + $0x18] sm:$0xff]
    %v55 = vld [vmem:[%s0 + $0x20] sm:$0xff]
    %v56 = vld [vmem:[%s0 + $0x28] sm:$0xff]
    %v57 = vld [vmem:[%s0 + $0x30] sm:$0xff]
    %v58 = vld [vmem:[%s0 + $0x38] sm:$0xff]
    %v59 = vld [vmem:[#allocation2] sm:$0xff]
    %v60 = vld [vmem:[#allocation2 + $0x8] sm:$0x3]
    %v61 = vld [vmem:[%s3] sm:$0x1]
    %v63 = vlaneseq
    %v64 = vshrl.u32 %v63, 7
    %v65 = vsub.s32 0, %v64
    %v66 = vrot.slane %v61, %v65
    %vm68 = vcmask 80896
    %v70 = vsel %vm68, %v51, 0
    %v73 = vsel %vm68, %v52, 0
    %v76 = vsel %vm68, %v53, 0
    %v79 = vsel %vm68, %v54, 0
    %v82 = vsel %vm68, %v55, 0
    %v85 = vsel %vm68, %v56, 0
    %v88 = vsel %vm68, %v57, 0
    %v91 = vsel %vm68, %v58, 0
    %vm93 = vcmask 1041408
    %v95 = vsel %vm93, %v60, 0
    %97 = vmatprep.subr.mxu0 0.0
    %98 = vmatpush1.msra.mxu0 %v59
    %99 = vmatprep.subr.mxu0 0.0
    %100 = vmatpush1.msra.mxu0 %v95
    %101 = vmatprep.subr.mxu0 0.0
    %102 = vmatpush1.msra.mxu0 0.0
    %103 = vmatprep.subr.mxu0 0.0
    %104 = vmatpush1.msra.mxu0 0.0
    %105 = vmatprep.subr.mxu0 0.0
    %106 = vmatpush1.msra.mxu0 0.0
    %107 = vmatprep.subr.mxu0 0.0
    %108 = vmatpush1.msra.mxu0 0.0
    %109 = vmatprep.subr.mxu0 0.0
    %110 = vmatpush1.msra.mxu0 0.0
    %111 = vmatprep.subr.mxu0 0.0
    %112 = vmatpush1.msra.mxu0 0.0
    %113 = vmatprep.subr.mxu0 0.0
    %114 = vmatpush1.msra.mxu0 0.0
    %115 = vmatprep.subr.mxu0 0.0
    %116 = vmatpush1.msra.mxu0 0.0
    %117 = vmatprep.subr.mxu0 0.0
    %118 = vmatpush1.msra.mxu0 0.0
    %119 = vmatprep.subr.mxu0 0.0
    %120 = vmatpush1.msra.mxu0 0.0
    %121 = vmatprep.subr.mxu0 0.0
    %122 = vmatpush1.msra.mxu0 0.0
    %123 = vmatprep.subr.mxu0 0.0
    %124 = vmatpush1.msra.mxu0 0.0
    %125 = vmatprep.subr.mxu0 0.0
    %126 = vmatpush1.msra.mxu0 0.0
    %127 = vmatprep.subr.mxu0 0.0
    %128 = vmatpush1.msra.mxu0 0.0
    %129 = vmatprep.subr.mxu0 0.0
    %130 = vmatpush1.msra.mxu0 0.0
    %131 = vmatprep.subr.mxu0 0.0
    %132 = vmatpush1.msra.mxu0 0.0
    %133 = vmatprep.subr.mxu0 0.0
    %134 = vmatpush1.msra.mxu0 0.0
    %135 = vmatprep.subr.mxu0 0.0
    %136 = vmatpush1.msra.mxu0 0.0
    %137 = vmatprep.subr.mxu0 0.0
    %138 = vmatpush1.msra.mxu0 0.0
    %139 = vmatprep.subr.mxu0 0.0
    %140 = vmatpush1.msra.mxu0 0.0
    %141 = vmatprep.subr.mxu0 0.0
    %142 = vmatpush1.msra.mxu0 0.0
    %143 = vmatprep.subr.mxu0 0.0
    %144 = vmatpush1.msra.mxu0 0.0
    %145 = vmatprep.subr.mxu0 0.0
    %146 = vmatpush1.msra.mxu0 0.0
    %147 = vmatprep.subr.mxu0 0.0
    %148 = vmatpush1.msra.mxu0 0.0
    %149 = vmatprep.subr.mxu0 0.0
    %150 = vmatpush1.msra.mxu0 0.0
    %151 = vmatprep.subr.mxu0 0.0
    %152 = vmatpush1.msra.mxu0 0.0
    %153 = vmatprep.subr.mxu0 0.0
    %154 = vmatpush1.msra.mxu0 0.0
    %155 = vmatprep.subr.mxu0 0.0
    %156 = vmatpush1.msra.mxu0 0.0
    %157 = vmatprep.subr.mxu0 0.0
    %158 = vmatpush1.msra.mxu0 0.0
    %159 = vmatprep.subr.mxu0 0.0
    %160 = vmatpush1.msra.mxu0 0.0
    %161 = vmatprep.mubr.f32.mxu0 0.0
    %162 = vmatmul.mubr.f32.gmra.mrb[0].mxu0 %v70
    %v163 = vpop.f32.mrb[0].mxu0
    %v164 = vadd.f32 %v66, %v163
    %v165 = vpop.f32.mrb[0].mxu0
    %166 = vmatprep.mubr.f32.mxu0 0.0
    %167 = vmatmul.mubr.f32.gmra.mrb[0].mxu0 %v73
    %v168 = vpop.f32.mrb[0].mxu0
    %v169 = vadd.f32 %v66, %v168
    %v170 = vpop.f32.mrb[0].mxu0
    %171 = vmatprep.mubr.f32.mxu0 0.0
    %172 = vmatmul.mubr.f32.gmra.mrb[0].mxu0 %v76
    %v173 = vpop.f32.mrb[0].mxu0
    %v174 = vadd.f32 %v66, %v173
    %v175 = vpop.f32.mrb[0].mxu0
    %176 = vmatprep.mubr.f32.mxu0 0.0
    %177 = vmatmul.mubr.f32.gmra.mrb[0].mxu0 %v79
    %v178 = vpop.f32.mrb[0].mxu0
    %v179 = vadd.f32 %v66, %v178
    %v180 = vpop.f32.mrb[0].mxu0
    %181 = vmatprep.mubr.f32.mxu0 0.0
    %182 = vmatmul.mubr.f32.gmra.mrb[0].mxu0 %v82
    %v183 = vpop.f32.mrb[0].mxu0
    %v184 = vadd.f32 %v66, %v183
    %v185 = vpop.f32.mrb[0].mxu0
    %186 = vmatprep.mubr.f32.mxu0 0.0
    %187 = vmatmul.mubr.f32.gmra.mrb[0].mxu0 %v85
    %v188 = vpop.f32.mrb[0].mxu0
    %v189 = vadd.f32 %v66, %v188
    %v190 = vpop.f32.mrb[0].mxu0
    %191 = vmatprep.mubr.f32.mxu0 0.0
    %192 = vmatmul.mubr.f32.gmra.mrb[0].mxu0 %v88
    %v193 = vpop.f32.mrb[0].mxu0
    %v194 = vadd.f32 %v66, %v193
    %v195 = vpop.f32.mrb[0].mxu0
    %196 = vmatprep.mubr.f32.mxu0 0.0
    %197 = vmatmul.mubr.f32.gmra.mrb[0].mxu0 %v91
    %v198 = vpop.f32.mrb[0].mxu0
    %v199 = vadd.f32 %v66, %v198
    %v200 = vpop.f32.mrb[0].mxu0
    %201 = vdwg.mxu0
    %v202 = vld [vmem:[#allocation4] sm:$0xff]
    %v203 = vld [vmem:[#allocation4 + $0x8] sm:$0xff]
    %v204 = vld [vmem:[#allocation4 + $0x10] sm:$0xff]
    %v205 = vld [vmem:[#allocation4 + $0x18] sm:$0xff]
    %v206 = vld [vmem:[#allocation4 + $0x20] sm:$0xff]
    %v207 = vld [vmem:[#allocation4 + $0x28] sm:$0xff]
    %v208 = vld [vmem:[#allocation4 + $0x30] sm:$0xff]
    %v209 = vld [vmem:[#allocation4 + $0x38] sm:$0xff]
    %v210 = vld [vmem:[#allocation4 + $0x40] sm:$0xff]
    %v211 = vld [vmem:[#allocation4 + $0x48] sm:$0xff]
    %v212 = vld [vmem:[#allocation4 + $0x50] sm:$0xff]
    %v213 = vld [vmem:[#allocation4 + $0x58] sm:$0xff]
    %v214 = vld [vmem:[#allocation4 + $0x60] sm:$0xff]
    %v215 = vld [vmem:[#allocation4 + $0x68] sm:$0xff]
    %v216 = vld [vmem:[#allocation4 + $0x70] sm:$0xff]
    %v217 = vld [vmem:[#allocation4 + $0x78] sm:$0xff]
    %218 = vmatprep.subr.mxu0 0.0
    %219 = vmatpush1.msra.mxu0 %v202
    %220 = vmatprep.subr.mxu0 0.0
    %221 = vmatpush1.msra.mxu0 %v203
    %222 = vmatprep.subr.mxu0 0.0
    %223 = vmatpush1.msra.mxu0 %v204
    %224 = vmatprep.subr.mxu0 0.0
    %225 = vmatpush1.msra.mxu0 %v205
    %226 = vmatprep.subr.mxu0 0.0
    %227 = vmatpush1.msra.mxu0 %v206
    %228 = vmatprep.subr.mxu0 0.0
    %229 = vmatpush1.msra.mxu0 %v207
    %230 = vmatprep.subr.mxu0 0.0
    %231 = vmatpush1.msra.mxu0 %v208
    %232 = vmatprep.subr.mxu0 0.0
    %233 = vmatpush1.msra.mxu0 %v209
    %234 = vmatprep.subr.mxu0 0.0
    %235 = vmatpush1.msra.mxu0 %v210
    %236 = vmatprep.subr.mxu0 0.0
    %237 = vmatpush1.msra.mxu0 %v211
    %238 = vmatprep.subr.mxu0 0.0
    %239 = vmatpush1.msra.mxu0 %v212
    %240 = vmatprep.subr.mxu0 0.0
    %241 = vmatpush1.msra.mxu0 %v213
    %242 = vmatprep.subr.mxu0 0.0
    %243 = vmatpush1.msra.mxu0 %v214
    %244 = vmatprep.subr.mxu0 0.0
    %245 = vmatpush1.msra.mxu0 %v215
    %246 = vmatprep.subr.mxu0 0.0
    %247 = vmatpush1.msra.mxu0 %v216
    %248 = vmatprep.subr.mxu0 0.0
    %249 = vmatpush1.msra.mxu0 %v217
    %250 = vmatprep.subr.mxu0 0.0
    %251 = vmatpush1.msra.mxu0 0.0
    %252 = vmatprep.subr.mxu0 0.0
    %253 = vmatpush1.msra.mxu0 0.0
    %254 = vmatprep.subr.mxu0 0.0
    %255 = vmatpush1.msra.mxu0 0.0
    %256 = vmatprep.subr.mxu0 0.0
    %257 = vmatpush1.msra.mxu0 0.0
    %258 = vmatprep.subr.mxu0 0.0
    %259 = vmatpush1.msra.mxu0 0.0
    %260 = vmatprep.subr.mxu0 0.0
    %261 = vmatpush1.msra.mxu0 0.0
    %262 = vmatprep.subr.mxu0 0.0
    %263 = vmatpush1.msra.mxu0 0.0
    %264 = vmatprep.subr.mxu0 0.0
    %265 = vmatpush1.msra.mxu0 0.0
    %266 = vmatprep.subr.mxu0 0.0
    %267 = vmatpush1.msra.mxu0 0.0
    %268 = vmatprep.subr.mxu0 0.0
    %269 = vmatpush1.msra.mxu0 0.0
    %270 = vmatprep.subr.mxu0 0.0
    %271 = vmatpush1.msra.mxu0 0.0
    %272 = vmatprep.subr.mxu0 0.0
    %273 = vmatpush1.msra.mxu0 0.0
    %274 = vmatprep.subr.mxu0 0.0
    %275 = vmatpush1.msra.mxu0 0.0
    %276 = vmatprep.subr.mxu0 0.0
    %277 = vmatpush1.msra.mxu0 0.0
    %278 = vmatprep.subr.mxu0 0.0
    %279 = vmatpush1.msra.mxu0 0.0
    %280 = vmatprep.subr.mxu0 0.0
    %281 = vmatpush1.msra.mxu0 0.0
    %282 = vmatprep.mubr.f32.mxu0 0.0
    %283 = vmatmul.mubr.f32.gmra.mrb[0].mxu0 0.0
    %v284 = vpop.f32.mrb[0].mxu0
    %v285 = vadd.f32 0.0, %v284
    %v286 = vpop.f32.mrb[0].mxu0
    %287 = vdwg.mxu0
    %v288 = vadd.f32 %v164, %v285
    %v289 = vtanh.pop %v288
    %290 = vmatprep.subr.mxu0 0.0
    %291 = vmatpush1.msra.mxu0 %v202
    %292 = vmatprep.subr.mxu0 0.0
    %293 = vmatpush1.msra.mxu0 %v203
    %294 = vmatprep.subr.mxu0 0.0
    %295 = vmatpush1.msra.mxu0 %v204
    %296 = vmatprep.subr.mxu0 0.0
    %297 = vmatpush1.msra.mxu0 %v205
    %298 = vmatprep.subr.mxu0 0.0
    %299 = vmatpush1.msra.mxu0 %v206
    %300 = vmatprep.subr.mxu0 0.0
    %301 = vmatpush1.msra.mxu0 %v207
    %302 = vmatprep.subr.mxu0 0.0
    %303 = vmatpush1.msra.mxu0 %v208
    %304 = vmatprep.subr.mxu0 0.0
    %305 = vmatpush1.msra.mxu0 %v209
    %306 = vmatprep.subr.mxu0 0.0
    %307 = vmatpush1.msra.mxu0 %v210
    %308 = vmatprep.subr.mxu0 0.0
    %309 = vmatpush1.msra.mxu0 %v211
    %310 = vmatprep.subr.mxu0 0.0
    %311 = vmatpush1.msra.mxu0 %v212
    %312 = vmatprep.subr.mxu0 0.0
    %313 = vmatpush1.msra.mxu0 %v213
    %314 = vmatprep.subr.mxu0 0.0
    %315 = vmatpush1.msra.mxu0 %v214
    %316 = vmatprep.subr.mxu0 0.0
    %317 = vmatpush1.msra.mxu0 %v215
    %318 = vmatprep.subr.mxu0 0.0
    %319 = vmatpush1.msra.mxu0 %v216
    %320 = vmatprep.subr.mxu0 0.0
    %321 = vmatpush1.msra.mxu0 %v217
    %322 = vmatprep.subr.mxu0 0.0
    %323 = vmatpush1.msra.mxu0 0.0
    %324 = vmatprep.subr.mxu0 0.0
    %325 = vmatpush1.msra.mxu0 0.0
    %326 = vmatprep.subr.mxu0 0.0
    %327 = vmatpush1.msra.mxu0 0.0
    %328 = vmatprep.subr.mxu0 0.0
    %329 = vmatpush1.msra.mxu0 0.0
    %330 = vmatprep.subr.mxu0 0.0
    %331 = vmatpush1.msra.mxu0 0.0
    %332 = vmatprep.subr.mxu0 0.0
    %333 = vmatpush1.msra.mxu0 0.0
    %334 = vmatprep.subr.mxu0 0.0
    %335 = vmatpush1.msra.mxu0 0.0
    %336 = vmatprep.subr.mxu0 0.0
    %337 = vmatpush1.msra.mxu0 0.0
    %338 = vmatprep.subr.mxu0 0.0
    %339 = vmatpush1.msra.mxu0 0.0
    %340 = vmatprep.subr.mxu0 0.0
    %341 = vmatpush1.msra.mxu0 0.0
    %342 = vmatprep.subr.mxu0 0.0
    %343 = vmatpush1.msra.mxu0 0.0
    %344 = vmatprep.subr.mxu0 0.0
    %345 = vmatpush1.msra.mxu0 0.0
    %346 = vmatprep.subr.mxu0 0.0
    %347 = vmatpush1.msra.mxu0 0.0
    %348 = vmatprep.subr.mxu0 0.0
    %349 = vmatpush1.msra.mxu0 0.0
    %350 = vmatprep.subr.mxu0 0.0
    %351 = vmatpush1.msra.mxu0 0.0
    %352 = vmatprep.subr.mxu0 0.0
    %353 = vmatpush1.msra.mxu0 0.0
    %354 = vmatprep.mubr.f32.mxu0 0.0
    %355 = vmatmul.mubr.f32.gmra.mrb[0].mxu0 %v289
    %v356 = vpop.f32.mrb[0].mxu0
    %v357 = vadd.f32 0.0, %v356
    %v358 = vpop.f32.mrb[0].mxu0
    %359 = vdwg.mxu0
    %v360 = vadd.f32 %v169, %v357
    %v361 = vtanh.pop %v360
    %362 = vmatprep.subr.mxu0 0.0
    %363 = vmatpush1.msra.mxu0 %v202
    %364 = vmatprep.subr.mxu0 0.0
    %365 = vmatpush1.msra.mxu0 %v203
    %366 = vmatprep.subr.mxu0 0.0
    %367 = vmatpush1.msra.mxu0 %v204
    %368 = vmatprep.subr.mxu0 0.0
    %369 = vmatpush1.msra.mxu0 %v205
    %370 = vmatprep.subr.mxu0 0.0
    %371 = vmatpush1.msra.mxu0 %v206
    %372 = vmatprep.subr.mxu0 0.0
    %373 = vmatpush1.msra.mxu0 %v207
    %374 = vmatprep.subr.mxu0 0.0
    %375 = vmatpush1.msra.mxu0 %v208
    %376 = vmatprep.subr.mxu0 0.0
    %377 = vmatpush1.msra.mxu0 %v209
    %378 = vmatprep.subr.mxu0 0.0
    %379 = vmatpush1.msra.mxu0 %v210
    %380 = vmatprep.subr.mxu0 0.0
    %381 = vmatpush1.msra.mxu0 %v211
    %382 = vmatprep.subr.mxu0 0.0
    %383 = vmatpush1.msra.mxu0 %v212
    %384 = vmatprep.subr.mxu0 0.0
    %385 = vmatpush1.msra.mxu0 %v213
    %386 = vmatprep.subr.mxu0 0.0
    %387 = vmatpush1.msra.mxu0 %v214
    %388 = vmatprep.subr.mxu0 0.0
    %389 = vmatpush1.msra.mxu0 %v215
    %390 = vmatprep.subr.mxu0 0.0
    %391 = vmatpush1.msra.mxu0 %v216
    %392 = vmatprep.subr.mxu0 0.0
    %393 = vmatpush1.msra.mxu0 %v217
    %394 = vmatprep.subr.mxu0 0.0
    %395 = vmatpush1.msra.mxu0 0.0
    %396 = vmatprep.subr.mxu0 0.0
    %397 = vmatpush1.msra.mxu0 0.0
    %398 = vmatprep.subr.mxu0 0.0
    %399 = vmatpush1.msra.mxu0 0.0
    %400 = vmatprep.subr.mxu0 0.0
    %401 = vmatpush1.msra.mxu0 0.0
    %402 = vmatprep.subr.mxu0 0.0
    %403 = vmatpush1.msra.mxu0 0.0
    %404 = vmatprep.subr.mxu0 0.0
    %405 = vmatpush1.msra.mxu0 0.0
    %406 = vmatprep.subr.mxu0 0.0
    %407 = vmatpush1.msra.mxu0 0.0
    %408 = vmatprep.subr.mxu0 0.0
    %409 = vmatpush1.msra.mxu0 0.0
    %410 = vmatprep.subr.mxu0 0.0
    %411 = vmatpush1.msra.mxu0 0.0
    %412 = vmatprep.subr.mxu0 0.0
    %413 = vmatpush1.msra.mxu0 0.0
    %414 = vmatprep.subr.mxu0 0.0
    %415 = vmatpush1.msra.mxu0 0.0
    %416 = vmatprep.subr.mxu0 0.0
    %417 = vmatpush1.msra.mxu0 0.0
    %418 = vmatprep.subr.mxu0 0.0
    %419 = vmatpush1.msra.mxu0 0.0
    %420 = vmatprep.subr.mxu0 0.0
    %421 = vmatpush1.msra.mxu0 0.0
    %422 = vmatprep.subr.mxu0 0.0
    %423 = vmatpush1.msra.mxu0 0.0
    %424 = vmatprep.subr.mxu0 0.0
    %425 = vmatpush1.msra.mxu0 0.0
    %426 = vmatprep.mubr.f32.mxu0 0.0
    %427 = vmatmul.mubr.f32.gmra.mrb[0].mxu0 %v361
    %v428 = vpop.f32.mrb[0].mxu0
    %v429 = vadd.f32 0.0, %v428
    %v430 = vpop.f32.mrb[0].mxu0
    %431 = vdwg.mxu0
    %v432 = vadd.f32 %v174, %v429
    %v433 = vtanh.pop %v432
    %434 = vmatprep.subr.mxu0 0.0
    %435 = vmatpush1.msra.mxu0 %v202
    %436 = vmatprep.subr.mxu0 0.0
    %437 = vmatpush1.msra.mxu0 %v203
    %438 = vmatprep.subr.mxu0 0.0
    %439 = vmatpush1.msra.mxu0 %v204
    %440 = vmatprep.subr.mxu0 0.0
    %441 = vmatpush1.msra.mxu0 %v205
    %442 = vmatprep.subr.mxu0 0.0
    %443 = vmatpush1.msra.mxu0 %v206
    %444 = vmatprep.subr.mxu0 0.0
    %445 = vmatpush1.msra.mxu0 %v207
    %446 = vmatprep.subr.mxu0 0.0
    %447 = vmatpush1.msra.mxu0 %v208
    %448 = vmatprep.subr.mxu0 0.0
    %449 = vmatpush1.msra.mxu0 %v209
    %450 = vmatprep.subr.mxu0 0.0
    %451 = vmatpush1.msra.mxu0 %v210
    %452 = vmatprep.subr.mxu0 0.0
    %453 = vmatpush1.msra.mxu0 %v211
    %454 = vmatprep.subr.mxu0 0.0
    %455 = vmatpush1.msra.mxu0 %v212
    %456 = vmatprep.subr.mxu0 0.0
    %457 = vmatpush1.msra.mxu0 %v213
    %458 = vmatprep.subr.mxu0 0.0
    %459 = vmatpush1.msra.mxu0 %v214
    %460 = vmatprep.subr.mxu0 0.0
    %461 = vmatpush1.msra.mxu0 %v215
    %462 = vmatprep.subr.mxu0 0.0
    %463 = vmatpush1.msra.mxu0 %v216
    %464 = vmatprep.subr.mxu0 0.0
    %465 = vmatpush1.msra.mxu0 %v217
    %466 = vmatprep.subr.mxu0 0.0
    %467 = vmatpush1.msra.mxu0 0.0
    %468 = vmatprep.subr.mxu0 0.0
    %469 = vmatpush1.msra.mxu0 0.0
    %470 = vmatprep.subr.mxu0 0.0
    %471 = vmatpush1.msra.mxu0 0.0
    %472 = vmatprep.subr.mxu0 0.0
    %473 = vmatpush1.msra.mxu0 0.0
    %474 = vmatprep.subr.mxu0 0.0
    %475 = vmatpush1.msra.mxu0 0.0
    %476 = vmatprep.subr.mxu0 0.0
    %477 = vmatpush1.msra.mxu0 0.0
    %478 = vmatprep.subr.mxu0 0.0
    %479 = vmatpush1.msra.mxu0 0.0
    %480 = vmatprep.subr.mxu0 0.0
    %481 = vmatpush1.msra.mxu0 0.0
    %482 = vmatprep.subr.mxu0 0.0
    %483 = vmatpush1.msra.mxu0 0.0
    %484 = vmatprep.subr.mxu0 0.0
    %485 = vmatpush1.msra.mxu0 0.0
    %486 = vmatprep.subr.mxu0 0.0
    %487 = vmatpush1.msra.mxu0 0.0
    %488 = vmatprep.subr.mxu0 0.0
    %489 = vmatpush1.msra.mxu0 0.0
    %490 = vmatprep.subr.mxu0 0.0
    %491 = vmatpush1.msra.mxu0 0.0
    %492 = vmatprep.subr.mxu0 0.0
    %493 = vmatpush1.msra.mxu0 0.0
    %494 = vmatprep.subr.mxu0 0.0
    %495 = vmatpush1.msra.mxu0 0.0
    %496 = vmatprep.subr.mxu0 0.0
    %497 = vmatpush1.msra.mxu0 0.0
    %498 = vmatprep.mubr.f32.mxu0 0.0
    %499 = vmatmul.mubr.f32.gmra.mrb[0].mxu0 %v433
    %v500 = vpop.f32.mrb[0].mxu0
    %v501 = vadd.f32 0.0, %v500
    %v502 = vpop.f32.mrb[0].mxu0
    %503 = vdwg.mxu0
    %v504 = vadd.f32 %v179, %v501
    %v505 = vtanh.pop %v504
    %506 = vmatprep.subr.mxu0 0.0
    %507 = vmatpush1.msra.mxu0 %v202
    %508 = vmatprep.subr.mxu0 0.0
    %509 = vmatpush1.msra.mxu0 %v203
    %510 = vmatprep.subr.mxu0 0.0
    %511 = vmatpush1.msra.mxu0 %v204
    %512 = vmatprep.subr.mxu0 0.0
    %513 = vmatpush1.msra.mxu0 %v205
    %514 = vmatprep.subr.mxu0 0.0
    %515 = vmatpush1.msra.mxu0 %v206
    %516 = vmatprep.subr.mxu0 0.0
    %517 = vmatpush1.msra.mxu0 %v207
    %518 = vmatprep.subr.mxu0 0.0
    %519 = vmatpush1.msra.mxu0 %v208
    %520 = vmatprep.subr.mxu0 0.0
    %521 = vmatpush1.msra.mxu0 %v209
    %522 = vmatprep.subr.mxu0 0.0
    %523 = vmatpush1.msra.mxu0 %v210
    %524 = vmatprep.subr.mxu0 0.0
    %525 = vmatpush1.msra.mxu0 %v211
    %526 = vmatprep.subr.mxu0 0.0
    %527 = vmatpush1.msra.mxu0 %v212
    %528 = vmatprep.subr.mxu0 0.0
    %529 = vmatpush1.msra.mxu0 %v213
    %530 = vmatprep.subr.mxu0 0.0
    %531 = vmatpush1.msra.mxu0 %v214
    %532 = vmatprep.subr.mxu0 0.0
    %533 = vmatpush1.msra.mxu0 %v215
    %534 = vmatprep.subr.mxu0 0.0
    %535 = vmatpush1.msra.mxu0 %v216
    %536 = vmatprep.subr.mxu0 0.0
    %537 = vmatpush1.msra.mxu0 %v217
    %538 = vmatprep.subr.mxu0 0.0
    %539 = vmatpush1.msra.mxu0 0.0
    %540 = vmatprep.subr.mxu0 0.0
    %541 = vmatpush1.msra.mxu0 0.0
    %542 = vmatprep.subr.mxu0 0.0
    %543 = vmatpush1.msra.mxu0 0.0
    %544 = vmatprep.subr.mxu0 0.0
    %545 = vmatpush1.msra.mxu0 0.0
    %546 = vmatprep.subr.mxu0 0.0
    %547 = vmatpush1.msra.mxu0 0.0
    %548 = vmatprep.subr.mxu0 0.0
    %549 = vmatpush1.msra.mxu0 0.0
    %550 = vmatprep.subr.mxu0 0.0
    %551 = vmatpush1.msra.mxu0 0.0
    %552 = vmatprep.subr.mxu0 0.0
    %553 = vmatpush1.msra.mxu0 0.0
    %554 = vmatprep.subr.mxu0 0.0
    %555 = vmatpush1.msra.mxu0 0.0
    %556 = vmatprep.subr.mxu0 0.0
    %557 = vmatpush1.msra.mxu0 0.0
    %558 = vmatprep.subr.mxu0 0.0
    %559 = vmatpush1.msra.mxu0 0.0
    %560 = vmatprep.subr.mxu0 0.0
    %561 = vmatpush1.msra.mxu0 0.0
    %562 = vmatprep.subr.mxu0 0.0
    %563 = vmatpush1.msra.mxu0 0.0
    %564 = vmatprep.subr.mxu0 0.0
    %565 = vmatpush1.msra.mxu0 0.0
    %566 = vmatprep.subr.mxu0 0.0
    %567 = vmatpush1.msra.mxu0 0.0
    %568 = vmatprep.subr.mxu0 0.0
    %569 = vmatpush1.msra.mxu0 0.0
    %570 = vmatprep.mubr.f32.mxu0 0.0
    %571 = vmatmul.mubr.f32.gmra.mrb[0].mxu0 %v505
    %v572 = vpop.f32.mrb[0].mxu0
    %v573 = vadd.f32 0.0, %v572
    %v574 = vpop.f32.mrb[0].mxu0
    %575 = vdwg.mxu0
    %v576 = vadd.f32 %v184, %v573
    %v577 = vtanh.pop %v576
    %578 = vmatprep.subr.mxu0 0.0
    %579 = vmatpush1.msra.mxu0 %v202
    %580 = vmatprep.subr.mxu0 0.0
    %581 = vmatpush1.msra.mxu0 %v203
    %582 = vmatprep.subr.mxu0 0.0
    %583 = vmatpush1.msra.mxu0 %v204
    %584 = vmatprep.subr.mxu0 0.0
    %585 = vmatpush1.msra.mxu0 %v205
    %586 = vmatprep.subr.mxu0 0.0
    %587 = vmatpush1.msra.mxu0 %v206
    %588 = vmatprep.subr.mxu0 0.0
    %589 = vmatpush1.msra.mxu0 %v207
    %590 = vmatprep.subr.mxu0 0.0
    %591 = vmatpush1.msra.mxu0 %v208
    %592 = vmatprep.subr.mxu0 0.0
    %593 = vmatpush1.msra.mxu0 %v209
    %594 = vmatprep.subr.mxu0 0.0
    %595 = vmatpush1.msra.mxu0 %v210
    %596 = vmatprep.subr.mxu0 0.0
    %597 = vmatpush1.msra.mxu0 %v211
    %598 = vmatprep.subr.mxu0 0.0
    %599 = vmatpush1.msra.mxu0 %v212
    %600 = vmatprep.subr.mxu0 0.0
    %601 = vmatpush1.msra.mxu0 %v213
    %602 = vmatprep.subr.mxu0 0.0
    %603 = vmatpush1.msra.mxu0 %v214
    %604 = vmatprep.subr.mxu0 0.0
    %605 = vmatpush1.msra.mxu0 %v215
    %606 = vmatprep.subr.mxu0 0.0
    %607 = vmatpush1.msra.mxu0 %v216
    %608 = vmatprep.subr.mxu0 0.0
    %609 = vmatpush1.msra.mxu0 %v217
    %610 = vmatprep.subr.mxu0 0.0
    %611 = vmatpush1.msra.mxu0 0.0
    %612 = vmatprep.subr.mxu0 0.0
    %613 = vmatpush1.msra.mxu0 0.0
    %614 = vmatprep.subr.mxu0 0.0
    %615 = vmatpush1.msra.mxu0 0.0
    %616 = vmatprep.subr.mxu0 0.0
    %617 = vmatpush1.msra.mxu0 0.0
    %618 = vmatprep.subr.mxu0 0.0
    %619 = vmatpush1.msra.mxu0 0.0
    %620 = vmatprep.subr.mxu0 0.0
    %621 = vmatpush1.msra.mxu0 0.0
    %622 = vmatprep.subr.mxu0 0.0
    %623 = vmatpush1.msra.mxu0 0.0
    %624 = vmatprep.subr.mxu0 0.0
    %625 = vmatpush1.msra.mxu0 0.0
    %626 = vmatprep.subr.mxu0 0.0
    %627 = vmatpush1.msra.mxu0 0.0
    %628 = vmatprep.subr.mxu0 0.0
    %629 = vmatpush1.msra.mxu0 0.0
    %630 = vmatprep.subr.mxu0 0.0
    %631 = vmatpush1.msra.mxu0 0.0
    %632 = vmatprep.subr.mxu0 0.0
    %633 = vmatpush1.msra.mxu0 0.0
    %634 = vmatprep.subr.mxu0 0.0
    %635 = vmatpush1.msra.mxu0 0.0
    %636 = vmatprep.subr.mxu0 0.0
    %637 = vmatpush1.msra.mxu0 0.0
    %638 = vmatprep.subr.mxu0 0.0
    %639 = vmatpush1.msra.mxu0 0.0
    %640 = vmatprep.subr.mxu0 0.0
    %641 = vmatpush1.msra.mxu0 0.0
    %642 = vmatprep.mubr.f32.mxu0 0.0
    %643 = vmatmul.mubr.f32.gmra.mrb[0].mxu0 %v577
    %v644 = vpop.f32.mrb[0].mxu0
    %v645 = vadd.f32 0.0, %v644
    %v646 = vpop.f32.mrb[0].mxu0
    %647 = vdwg.mxu0
    %v648 = vadd.f32 %v189, %v645
    %v649 = vtanh.pop %v648
    %650 = vmatprep.subr.mxu0 0.0
    %651 = vmatpush1.msra.mxu0 %v202
    %652 = vmatprep.subr.mxu0 0.0
    %653 = vmatpush1.msra.mxu0 %v203
    %654 = vmatprep.subr.mxu0 0.0
    %655 = vmatpush1.msra.mxu0 %v204
    %656 = vmatprep.subr.mxu0 0.0
    %657 = vmatpush1.msra.mxu0 %v205
    %658 = vmatprep.subr.mxu0 0.0
    %659 = vmatpush1.msra.mxu0 %v206
    %660 = vmatprep.subr.mxu0 0.0
    %661 = vmatpush1.msra.mxu0 %v207
    %662 = vmatprep.subr.mxu0 0.0
    %663 = vmatpush1.msra.mxu0 %v208
    %664 = vmatprep.subr.mxu0 0.0
    %665 = vmatpush1.msra.mxu0 %v209
    %666 = vmatprep.subr.mxu0 0.0
    %667 = vmatpush1.msra.mxu0 %v210
    %668 = vmatprep.subr.mxu0 0.0
    %669 = vmatpush1.msra.mxu0 %v211
    %670 = vmatprep.subr.mxu0 0.0
    %671 = vmatpush1.msra.mxu0 %v212
    %672 = vmatprep.subr.mxu0 0.0
    %673 = vmatpush1.msra.mxu0 %v213
    %674 = vmatprep.subr.mxu0 0.0
    %675 = vmatpush1.msra.mxu0 %v214
    %676 = vmatprep.subr.mxu0 0.0
    %677 = vmatpush1.msra.mxu0 %v215
    %678 = vmatprep.subr.mxu0 0.0
    %679 = vmatpush1.msra.mxu0 %v216
    %680 = vmatprep.subr.mxu0 0.0
    %681 = vmatpush1.msra.mxu0 %v217
    %682 = vmatprep.subr.mxu0 0.0
    %683 = vmatpush1.msra.mxu0 0.0
    %684 = vmatprep.subr.mxu0 0.0
    %685 = vmatpush1.msra.mxu0 0.0
    %686 = vmatprep.subr.mxu0 0.0
    %687 = vmatpush1.msra.mxu0 0.0
    %688 = vmatprep.subr.mxu0 0.0
    %689 = vmatpush1.msra.mxu0 0.0
    %690 = vmatprep.subr.mxu0 0.0
    %691 = vmatpush1.msra.mxu0 0.0
    %692 = vmatprep.subr.mxu0 0.0
    %693 = vmatpush1.msra.mxu0 0.0
    %694 = vmatprep.subr.mxu0 0.0
    %695 = vmatpush1.msra.mxu0 0.0
    %696 = vmatprep.subr.mxu0 0.0
    %697 = vmatpush1.msra.mxu0 0.0
    %698 = vmatprep.subr.mxu0 0.0
    %699 = vmatpush1.msra.mxu0 0.0
    %700 = vmatprep.subr.mxu0 0.0
    %701 = vmatpush1.msra.mxu0 0.0
    %702 = vmatprep.subr.mxu0 0.0
    %703 = vmatpush1.msra.mxu0 0.0
    %704 = vmatprep.subr.mxu0 0.0
    %705 = vmatpush1.msra.mxu0 0.0
    %706 = vmatprep.subr.mxu0 0.0
    %707 = vmatpush1.msra.mxu0 0.0
    %708 = vmatprep.subr.mxu0 0.0
    %709 = vmatpush1.msra.mxu0 0.0
    %710 = vmatprep.subr.mxu0 0.0
    %711 = vmatpush1.msra.mxu0 0.0
    %712 = vmatprep.subr.mxu0 0.0
    %713 = vmatpush1.msra.mxu0 0.0
    %714 = vmatprep.mubr.f32.mxu0 0.0
    %715 = vmatmul.mubr.f32.gmra.mrb[0].mxu0 %v649
    %v716 = vpop.f32.mrb[0].mxu0
    %v717 = vadd.f32 0.0, %v716
    %v718 = vpop.f32.mrb[0].mxu0
    %719 = vdwg.mxu0
    %v720 = vadd.f32 %v194, %v717
    %v721 = vtanh.pop %v720
    %722 = vmatprep.subr.mxu0 0.0
    %723 = vmatpush1.msra.mxu0 %v202
    %724 = vmatprep.subr.mxu0 0.0
    %725 = vmatpush1.msra.mxu0 %v203
    %726 = vmatprep.subr.mxu0 0.0
    %727 = vmatpush1.msra.mxu0 %v204
    %728 = vmatprep.subr.mxu0 0.0
    %729 = vmatpush1.msra.mxu0 %v205
    %730 = vmatprep.subr.mxu0 0.0
    %731 = vmatpush1.msra.mxu0 %v206
    %732 = vmatprep.subr.mxu0 0.0
    %733 = vmatpush1.msra.mxu0 %v207
    %734 = vmatprep.subr.mxu0 0.0
    %735 = vmatpush1.msra.mxu0 %v208
    %736 = vmatprep.subr.mxu0 0.0
    %737 = vmatpush1.msra.mxu0 %v209
    %738 = vmatprep.subr.mxu0 0.0
    %739 = vmatpush1.msra.mxu0 %v210
    %740 = vmatprep.subr.mxu0 0.0
    %741 = vmatpush1.msra.mxu0 %v211
    %742 = vmatprep.subr.mxu0 0.0
    %743 = vmatpush1.msra.mxu0 %v212
    %744 = vmatprep.subr.mxu0 0.0
    %745 = vmatpush1.msra.mxu0 %v213
    %746 = vmatprep.subr.mxu0 0.0
    %747 = vmatpush1.msra.mxu0 %v214
    %748 = vmatprep.subr.mxu0 0.0
    %749 = vmatpush1.msra.mxu0 %v215
    %750 = vmatprep.subr.mxu0 0.0
    %751 = vmatpush1.msra.mxu0 %v216
    %752 = vmatprep.subr.mxu0 0.0
    %753 = vmatpush1.msra.mxu0 %v217
    %754 = vmatprep.subr.mxu0 0.0
    %755 = vmatpush1.msra.mxu0 0.0
    %756 = vmatprep.subr.mxu0 0.0
    %757 = vmatpush1.msra.mxu0 0.0
    %758 = vmatprep.subr.mxu0 0.0
    %759 = vmatpush1.msra.mxu0 0.0
    %760 = vmatprep.subr.mxu0 0.0
    %761 = vmatpush1.msra.mxu0 0.0
    %762 = vmatprep.subr.mxu0 0.0
    %763 = vmatpush1.msra.mxu0 0.0
    %764 = vmatprep.subr.mxu0 0.0
    %765 = vmatpush1.msra.mxu0 0.0
    %766 = vmatprep.subr.mxu0 0.0
    %767 = vmatpush1.msra.mxu0 0.0
    %768 = vmatprep.subr.mxu0 0.0
    %769 = vmatpush1.msra.mxu0 0.0
    %770 = vmatprep.subr.mxu0 0.0
    %771 = vmatpush1.msra.mxu0 0.0
    %772 = vmatprep.subr.mxu0 0.0
    %773 = vmatpush1.msra.mxu0 0.0
    %774 = vmatprep.subr.mxu0 0.0
    %775 = vmatpush1.msra.mxu0 0.0
    %776 = vmatprep.subr.mxu0 0.0
    %777 = vmatpush1.msra.mxu0 0.0
    %778 = vmatprep.subr.mxu0 0.0
    %779 = vmatpush1.msra.mxu0 0.0
    %780 = vmatprep.subr.mxu0 0.0
    %781 = vmatpush1.msra.mxu0 0.0
    %782 = vmatprep.subr.mxu0 0.0
    %783 = vmatpush1.msra.mxu0 0.0
    %784 = vmatprep.subr.mxu0 0.0
    %785 = vmatpush1.msra.mxu0 0.0
    %786 = vmatprep.mubr.f32.mxu0 0.0
    %787 = vmatmul.mubr.f32.gmra.mrb[0].mxu0 %v721
    %v788 = vpop.f32.mrb[0].mxu0
    %v789 = vadd.f32 0.0, %v788
    %v790 = vpop.f32.mrb[0].mxu0
    %791 = vdwg.mxu0
    %v792 = vadd.f32 %v199, %v789
    %v793 = vtanh.pop %v792
    %v794 = vld [vmem:[%s4] sm:$0xff]
    %v795 = vld [vmem:[%s4 + $0x8] sm:$0xff]
    %v796 = vld [vmem:[%s4 + $0x10] sm:$0xff]
    %v797 = vld [vmem:[%s4 + $0x18] sm:$0xff]
    %v798 = vld [vmem:[%s4 + $0x20] sm:$0xff]
    %v799 = vld [vmem:[%s4 + $0x28] sm:$0xff]
    %v800 = vld [vmem:[%s4 + $0x30] sm:$0xff]
    %v801 = vld [vmem:[%s4 + $0x38] sm:$0xff]
    %v802 = vld [vmem:[%s4 + $0x40] sm:$0xff]
    %v803 = vld [vmem:[%s4 + $0x48] sm:$0xff]
    %v804 = vld [vmem:[%s4 + $0x50] sm:$0xff]
    %v805 = vld [vmem:[%s4 + $0x58] sm:$0xff]
    %v806 = vld [vmem:[%s4 + $0x60] sm:$0xff]
    %v807 = vld [vmem:[%s4 + $0x68] sm:$0xff]
    %v808 = vld [vmem:[%s4 + $0x70] sm:$0xff]
    %v809 = vld [vmem:[%s4 + $0x78] sm:$0xff]
    %v810 = vld [vmem:[%s5] sm:$0x1]
    %v812 = vlaneseq
    %v813 = vshrl.u32 %v812, 7
    %v814 = vsub.s32 0, %v813
    %v815 = vrot.slane %v810, %v814
    %817 = vmatprep.subr.mxu0 0.0
    %818 = vmatpush1.msra.mxu0 %v794
    %819 = vmatprep.subr.mxu0 0.0
    %820 = vmatpush1.msra.mxu0 %v795
    %821 = vmatprep.subr.mxu0 0.0
    %822 = vmatpush1.msra.mxu0 %v796
    %823 = vmatprep.subr.mxu0 0.0
    %824 = vmatpush1.msra.mxu0 %v797
    %825 = vmatprep.subr.mxu0 0.0
    %826 = vmatpush1.msra.mxu0 %v798
    %827 = vmatprep.subr.mxu0 0.0
    %828 = vmatpush1.msra.mxu0 %v799
    %829 = vmatprep.subr.mxu0 0.0
    %830 = vmatpush1.msra.mxu0 %v800
    %831 = vmatprep.subr.mxu0 0.0
    %832 = vmatpush1.msra.mxu0 %v801
    %833 = vmatprep.subr.mxu0 0.0
    %834 = vmatpush1.msra.mxu0 %v802
    %835 = vmatprep.subr.mxu0 0.0
    %836 = vmatpush1.msra.mxu0 %v803
    %837 = vmatprep.subr.mxu0 0.0
    %838 = vmatpush1.msra.mxu0 %v804
    %839 = vmatprep.subr.mxu0 0.0
    %840 = vmatpush1.msra.mxu0 %v805
    %841 = vmatprep.subr.mxu0 0.0
    %842 = vmatpush1.msra.mxu0 %v806
    %843 = vmatprep.subr.mxu0 0.0
    %844 = vmatpush1.msra.mxu0 %v807
    %845 = vmatprep.subr.mxu0 0.0
    %846 = vmatpush1.msra.mxu0 %v808
    %847 = vmatprep.subr.mxu0 0.0
    %848 = vmatpush1.msra.mxu0 %v809
    %849 = vmatprep.subr.mxu0 0.0
    %850 = vmatpush1.msra.mxu0 0.0
    %851 = vmatprep.subr.mxu0 0.0
    %852 = vmatpush1.msra.mxu0 0.0
    %853 = vmatprep.subr.mxu0 0.0
    %854 = vmatpush1.msra.mxu0 0.0
    %855 = vmatprep.subr.mxu0 0.0
    %856 = vmatpush1.msra.mxu0 0.0
    %857 = vmatprep.subr.mxu0 0.0
    %858 = vmatpush1.msra.mxu0 0.0
    %859 = vmatprep.subr.mxu0 0.0
    %860 = vmatpush1.msra.mxu0 0.0
    %861 = vmatprep.subr.mxu0 0.0
    %862 = vmatpush1.msra.mxu0 0.0
    %863 = vmatprep.subr.mxu0 0.0
    %864 = vmatpush1.msra.mxu0 0.0
    %865 = vmatprep.subr.mxu0 0.0
    %866 = vmatpush1.msra.mxu0 0.0
    %867 = vmatprep.subr.mxu0 0.0
    %868 = vmatpush1.msra.mxu0 0.0
    %869 = vmatprep.subr.mxu0 0.0
    %870 = vmatpush1.msra.mxu0 0.0
    %871 = vmatprep.subr.mxu0 0.0
    %872 = vmatpush1.msra.mxu0 0.0
    %873 = vmatprep.subr.mxu0 0.0
    %874 = vmatpush1.msra.mxu0 0.0
    %875 = vmatprep.subr.mxu0 0.0
    %876 = vmatpush1.msra.mxu0 0.0
    %877 = vmatprep.subr.mxu0 0.0
    %878 = vmatpush1.msra.mxu0 0.0
    %879 = vmatprep.subr.mxu0 0.0
    %880 = vmatpush1.msra.mxu0 0.0
    %881 = vmatprep.mubr.f32.mxu0 0.0
    %882 = vmatmul.mubr.f32.gmra.mrb[0].mxu0 %v793
    %v883 = vpop.f32.mrb[0].mxu0
    %v884 = vadd.f32 %v815, %v883
    %v885 = vpop.f32.mrb[0].mxu0
    %886 = vdwg.mxu0
    %887 = vst [vmem:[%s6] sm:$0xff] %v884
    // Predicated region
    $region34: #{simple_rnn_forward.1} parent=1 // pred_check
      _
    $region35: #{simple_rnn_forward.1} parent=1 // pred_check_branch
      %889 = sbr.rel (0) target = $region37
    $region36: #{simple_rnn_forward.1} parent=1 // pred_region
      _
    $region37: #{simple_rnn_forward.1} parent=1 // pred_fallthru
      _
    // Predicated region
    $region38: #{simple_rnn_forward.1} parent=1 // pred_check
      _
    $region39: #{simple_rnn_forward.1} parent=1 // pred_check_branch
      %891 = sbr.rel (0) target = $region41
    $region40: #{simple_rnn_forward.1} parent=1 // pred_region
      _
    $region41: #{simple_rnn_forward.1} parent=1 // pred_fallthru
      _
    %892 = vsyncpa [#allocation3], 1
    %893 = vsyncpa [#allocation5], 1

</llo_original>
